<compile_context>
chip_gen: v7x
topology: tpu7x:2x2x1
jax: 0.10.0
libtpu: 0.0.40
codegen_flags: <defaults>
</compile_context>

<pallas_src>
import functools

import jax
import jax.numpy as jnp
from jax.experimental import pallas as pl
from jax.experimental.pallas import tpu as pltpu

IN_DIM = 150      # fc1 input features
HID_DIM = 64      # fc1 output features
OUT_DIM = 16      # fc2 output features
TB_MAX = 1024     # per-step row-tile cap (safe on v5e/v6e/v7x VMEM)


def _round_up(n, m):
    return ((n + m - 1) // m) * m


def _choose_tb(B, tb_max=TB_MAX, min_steps=2):
    """Batch tile: multiple of 8, <= tb_max, aiming for >= min_steps grid steps
    (so both v7x TensorCores get work) with a balanced (non-wasteful) tail."""
    if B <= 8 * min_steps:
        return _round_up(max(B, 1), 8)
    steps = max(min_steps, -(-B // tb_max))            # cdiv
    return min(tb_max, _round_up(-(-B // steps), 8))


def encoder_kernel(x_ref, w1_ref, b1_ref, w2_ref, b2_ref, out_ref):
    # Dropout layers are identity at inference time.
    # fc1: (tb,150) @ (150,64) on the MXU, bf16 operands, f32 accumulation.
    x = x_ref[...].astype(jnp.bfloat16)          # no-op if producer hands bf16
    h = jnp.dot(x, w1_ref[...], preferred_element_type=jnp.float32) + b1_ref[...]
    h = jnp.maximum(h, 0.0)                      # f32 VPU (v5e-safe)

    # fc2: (tb,64) @ (64,16); real 16-wide output block (masked 16-lane vst,
    # but far less HBM traffic than a zero-padded 128-wide f32 slab).
    z = jnp.dot(h.astype(jnp.bfloat16), w2_ref[...],
                preferred_element_type=jnp.float32) + b2_ref[...]
    out_ref[...] = jnp.maximum(z, 0.0)


def init_params(key):
    """Deterministic init; weights [in, out], biases [out] (PyTorch-style bounds)."""
    k1, k2, k3, k4 = jax.random.split(key, 4)

    def u(k, shape, fan_in):
        b = 1.0 / (fan_in ** 0.5)
        return jax.random.uniform(k, shape, jnp.float32, -b, b)

    return {
        "w1": u(k1, (IN_DIM, HID_DIM), IN_DIM),
        "b1": u(k2, (HID_DIM,), IN_DIM),
        "w2": u(k3, (HID_DIM, OUT_DIM), HID_DIM),
        "b2": u(k4, (OUT_DIM,), HID_DIM),
    }


def prepare_params(params):
    """One-time weight preparation (keep OUT of the per-call jitted path)."""
    return {
        "w1": params["w1"].astype(jnp.bfloat16),
        "b1": params["b1"].astype(jnp.float32).reshape(1, HID_DIM),
        "w2": params["w2"].astype(jnp.bfloat16),
        "b2": params["b2"].astype(jnp.float32).reshape(1, OUT_DIM),
    }


def mm_image_encoder_forward(x, prepared, *, tb=None):
    """Eval-mode MMImageEncoder.forward: (B,150) -> (B,16)."""
    B = x.shape[0]
    if tb is None:
        tb = _choose_tb(B)
    grid = (pl.cdiv(B, tb),)

    flops = 2 * B * (IN_DIM * HID_DIM + HID_DIM * OUT_DIM)
    bytes_accessed = (
        B * (IN_DIM * x.dtype.itemsize + OUT_DIM * 4)        # x read + out write
        + 2 * (IN_DIM * HID_DIM + HID_DIM * OUT_DIM)         # bf16 weights
        + 4 * (HID_DIM + OUT_DIM))                            # f32 biases

    return pl.pallas_call(
        encoder_kernel,
        out_shape=jax.ShapeDtypeStruct((B, OUT_DIM), jnp.float32),
        grid=grid,
        in_specs=[
            pl.BlockSpec((tb, IN_DIM), lambda i: (i, 0)),        # x (unpadded)
            pl.BlockSpec((IN_DIM, HID_DIM), lambda i: (0, 0)),   # w1 (resident)
            pl.BlockSpec((1, HID_DIM), lambda i: (0, 0)),        # b1
            pl.BlockSpec((HID_DIM, OUT_DIM), lambda i: (0, 0)),  # w2 (resident)
            pl.BlockSpec((1, OUT_DIM), lambda i: (0, 0)),        # b2
        ],
        out_specs=pl.BlockSpec((tb, OUT_DIM), lambda i: (i, 0)),
        compiler_params=pltpu.CompilerParams(
            dimension_semantics=("parallel",)),
        cost_estimate=pl.CostEstimate(
            flops=flops, transcendentals=0, bytes_accessed=bytes_accessed),
    )(x, prepared["w1"], prepared["b1"], prepared["w2"], prepared["b2"])


def reference_forward(x, p):
    """Pure-JAX reference mirroring the kernel numerics (bf16 operands, f32 accum)."""
    h = jnp.dot(x.astype(jnp.bfloat16), p["w1"].astype(jnp.bfloat16),
                preferred_element_type=jnp.float32) + p["b1"].reshape(1, HID_DIM)
    h = jnp.maximum(h, 0.0)
    z = jnp.dot(h.astype(jnp.bfloat16), p["w2"].astype(jnp.bfloat16),
                preferred_element_type=jnp.float32) + p["b2"].reshape(1, OUT_DIM)
    return jnp.maximum(z, 0.0)


if __name__ == "__main__":
    key = jax.random.PRNGKey(0)
    k_param, k_x = jax.random.split(key)
    params = init_params(k_param)
    prepared = prepare_params(params)   # one-time prep, outside the jitted call

    B = 200  # not a tile multiple: exercises the masked tail-block path
    x = jax.random.normal(k_x, (B, IN_DIM), dtype=jnp.float32)

    fwd = jax.jit(mm_image_encoder_forward)
    out = jax.block_until_ready(fwd(x, prepared))
    ref = jax.block_until_ready(reference_forward(x, params))

    assert out.shape == (B, OUT_DIM)
    assert jnp.allclose(out, ref, atol=2e-3, rtol=2e-3), (
        "mismatch vs JAX reference, max abs err = "
        + str(float(jnp.max(jnp.abs(out - ref)))))

    print("KERNEL_OK")
</pallas_src>

<mosaic_0001>
module attributes {stable_mosaic.version = 11 : i64} {
  func.func @encoder_kernel(%arg0: i32, %arg1: memref<104x150xf32, #tpu.memory_space<vmem>>, %arg2: memref<150x64xbf16, #tpu.memory_space<vmem>>, %arg3: memref<1x64xf32, #tpu.memory_space<vmem>>, %arg4: memref<64x16xbf16, #tpu.memory_space<vmem>>, %arg5: memref<1x16xf32, #tpu.memory_space<vmem>>, %arg6: memref<104x16xf32, #tpu.memory_space<vmem>>) attributes {dimension_semantics = [#tpu.dimension_semantics<parallel>], iteration_bounds = array<i64: 2>, scalar_prefetch = 0 : i64, scratch_operands = 0 : i64, tpu.core_type = #tpu.core_type<tc>, window_params = [{transform_indices = @transform_0, window_bounds = array<i64: 104, 150>}, {pipeline_mode = #tpu.pipeline_mode<synchronous>, transform_indices = @transform_1, window_bounds = array<i64: 150, 64>}, {pipeline_mode = #tpu.pipeline_mode<synchronous>, transform_indices = @transform_2, window_bounds = array<i64: 1, 64>}, {pipeline_mode = #tpu.pipeline_mode<synchronous>, transform_indices = @transform_3, window_bounds = array<i64: 64, 16>}, {pipeline_mode = #tpu.pipeline_mode<synchronous>, transform_indices = @transform_4, window_bounds = array<i64: 1, 16>}, {transform_indices = @transform_5, window_bounds = array<i64: 104, 16>}]} {
    %c0 = arith.constant 0 : index
    %c0_0 = arith.constant 0 : index
    %0 = vector.load %arg1[%c0, %c0_0] : memref<104x150xf32, #tpu.memory_space<vmem>>, vector<104x150xf32>
    %1 = arith.truncf %0 : vector<104x150xf32> to vector<104x150xbf16>
    %c0_1 = arith.constant 0 : index
    %c0_2 = arith.constant 0 : index
    %2 = vector.load %arg2[%c0_1, %c0_2] : memref<150x64xbf16, #tpu.memory_space<vmem>>, vector<150x64xbf16>
    %cst = arith.constant dense<0.000000e+00> : vector<104x64xf32>
    %3 = tpu.matmul %1, %2, %cst {dimension_numbers = #tpu.dot_dimension_numbers<[1], [0], [0], [1], [0, 0, 1, 1], [], []>} : vector<104x150xbf16>, vector<150x64xbf16>, vector<104x64xf32> -> vector<104x64xf32>
    %c0_3 = arith.constant 0 : index
    %c0_4 = arith.constant 0 : index
    %4 = vector.load %arg3[%c0_3, %c0_4] : memref<1x64xf32, #tpu.memory_space<vmem>>, vector<1x64xf32>
    %5 = vector.broadcast %4 : vector<1x64xf32> to vector<104x64xf32>
    %6 = arith.addf %3, %5 : vector<104x64xf32>
    %cst_5 = arith.constant 0.000000e+00 : f32
    %7 = vector.broadcast %cst_5 : f32 to vector<104x64xf32>
    %8 = arith.maximumf %6, %7 : vector<104x64xf32>
    %9 = arith.truncf %8 : vector<104x64xf32> to vector<104x64xbf16>
    %c0_6 = arith.constant 0 : index
    %c0_7 = arith.constant 0 : index
    %10 = vector.load %arg4[%c0_6, %c0_7] : memref<64x16xbf16, #tpu.memory_space<vmem>>, vector<64x16xbf16>
    %cst_8 = arith.constant dense<0.000000e+00> : vector<104x16xf32>
    %11 = tpu.matmul %9, %10, %cst_8 {dimension_numbers = #tpu.dot_dimension_numbers<[1], [0], [0], [1], [0, 0, 1, 1], [], []>} : vector<104x64xbf16>, vector<64x16xbf16>, vector<104x16xf32> -> vector<104x16xf32>
    %c0_9 = arith.constant 0 : index
    %c0_10 = arith.constant 0 : index
    %12 = vector.load %arg5[%c0_9, %c0_10] : memref<1x16xf32, #tpu.memory_space<vmem>>, vector<1x16xf32>
    %13 = vector.broadcast %12 : vector<1x16xf32> to vector<104x16xf32>
    %14 = arith.addf %11, %13 : vector<104x16xf32>
    %cst_11 = arith.constant 0.000000e+00 : f32
    %15 = vector.broadcast %cst_11 : f32 to vector<104x16xf32>
    %16 = arith.maximumf %14, %15 : vector<104x16xf32>
    %c0_12 = arith.constant 0 : index
    %c0_13 = arith.constant 0 : index
    %17 = vector.load %arg6[%c0_12, %c0_13] : memref<104x16xf32, #tpu.memory_space<vmem>>, vector<104x16xf32>
    tpu.vector_store %arg6[%c0_12, %c0_13], %16 {strides = array<i32>} : memref<104x16xf32, #tpu.memory_space<vmem>>, vector<104x16xf32>,
    return
  }
  func.func @transform_0(%arg0: i32) -> (i32, i32) {
    %c0_i32 = arith.constant 0 : i32
    %c0_i32_0 = arith.constant 0 : i32
    return %arg0, %c0_i32 : i32, i32
  }
  func.func @transform_1(%arg0: i32) -> (i32, i32) {
    %c0_i32 = arith.constant 0 : i32
    %c0_i32_0 = arith.constant 0 : i32
    %c0_i32_1 = arith.constant 0 : i32
    return %c0_i32, %c0_i32_0 : i32, i32
  }
  func.func @transform_2(%arg0: i32) -> (i32, i32) {
    %c0_i32 = arith.constant 0 : i32
    %c0_i32_0 = arith.constant 0 : i32
    %c0_i32_1 = arith.constant 0 : i32
    return %c0_i32, %c0_i32_0 : i32, i32
  }
  func.func @transform_3(%arg0: i32) -> (i32, i32) {
    %c0_i32 = arith.constant 0 : i32
    %c0_i32_0 = arith.constant 0 : i32
    %c0_i32_1 = arith.constant 0 : i32
    return %c0_i32, %c0_i32_0 : i32, i32
  }
  func.func @transform_4(%arg0: i32) -> (i32, i32) {
    %c0_i32 = arith.constant 0 : i32
    %c0_i32_0 = arith.constant 0 : i32
    %c0_i32_1 = arith.constant 0 : i32
    return %c0_i32, %c0_i32_0 : i32, i32
  }
  func.func @transform_5(%arg0: i32) -> (i32, i32) {
    %c0_i32 = arith.constant 0 : i32
    %c0_i32_0 = arith.constant 0 : i32
    return %arg0, %c0_i32 : i32, i32
  }
}

</mosaic_0001>

<llo_original>
// kernel: mm_image_encoder_forward.1
$region0: #{mm_image_encoder_forward.1}
  #allocation0 [shape = 'u32[]', space=smem, size = 0x4, offset = 0x4, fixed_abs, tag = 'smem constant byte address 0x4 - core index']
  #allocation1 [shape = 'u32[144,128]{1,0:T(1,128)}', space=vmem, size = 0x12000, scoped, tag = 'internal scratch']
  %s0 = inlined_call_operand.vmem [shape: f32[200,150], index: 0, kind: input, shape index: {}]
  %s1 = inlined_call_operand.vmem [shape: bf16[150,64], index: 1, kind: input, shape index: {}]
  %s2 = inlined_call_operand.vmem [shape: f32[1,64], index: 2, kind: input, shape index: {}]
  %s3 = inlined_call_operand.vmem [shape: bf16[64,16], index: 3, kind: input, shape index: {}]
  %s4 = inlined_call_operand.vmem [shape: f32[1,16], index: 4, kind: input, shape index: {}]
  %s5 = inlined_call_operand.vmem [shape: f32[200,16], index: 5, kind: output, shape index: {}]
  %s6 = sld [smem:[#allocation0]]
  $region101: #{mm_image_encoder_forward.1} parent=0
    _
  %s8 = ssub.s32 1, %s6
  %s9 = scalar_select 0, %s8, %s6
  $region1: #{mm_image_encoder_forward.1} parent=0
    #allocation2 [shape = 'u8[106496]{0}', space=vmem, size = 0x1a000, scoped, tag = 'output window, operand 0']
    loop: start=0, step=1, limit=4
    $region2: #{mm_image_encoder_forward.1} parent=1 // loop_pre_header
      _
    $region3: #{mm_image_encoder_forward.1} parent=1 // loop_header
      %s11 = sphi 0, %s15
      %p12 = scmp.ge.s32.totalorder %s11, 4
      %s21 = sphi 0, %s23
      %s24 = sphi 0, %s21
      %s25 = sphi 0, %s24
      %s41 = sphi 0, %s25
      %s45 = sphi 0, %s45
      %s47 = sphi 0, %s45
      %s48 = sphi 0, %s47
      %s62 = sphi 0, %s48
      %s66 = sphi 0, %s66
      %s68 = sphi 0, %s66
      %s69 = sphi 0, %s68
      %s83 = sphi 0, %s69
      %s87 = sphi 0, %s87
      %s89 = sphi 0, %s87
      %s90 = sphi 0, %s89
      %s104 = sphi 0, %s90
      %s108 = sphi 0, %s108
      %s110 = sphi 0, %s108
      %s111 = sphi 0, %s110
      %s125 = sphi 0, %s111
      %s131 = sphi 0, %s133
      %s134 = sphi 0, %s131
      %s135 = sphi 0, %s134
      %s151 = sphi 0, %s135
    $region4: #{mm_image_encoder_forward.1} parent=1 // loop_header_branch
      %14 = sbr.rel (%p12) target = $region8
    $region5: #{mm_image_encoder_forward.1} parent=1 // loop_body
      %s16 = ssub.s32 %s11, 1
      %s17 = ssub.s32 %s11, 2
      %s18 = sadd.s32 %s11, 1
      %s19 = ssub.s32 %s11, %s18
      %p20 = scmp.eq.s32.totalorder %s19, 0
      %s22 = sadd.s32 %s21, 1
      %s23 = scalar_select %p20, %s21, %s22
      %p26 = pneg %p20
      %p27 = scmp.eq.s32.totalorder %s11, 1
      %p28 = por %p26, %p27
      %p29 = scmp.ne.s32.totalorder %s21, %s24
      %p30 = scmp.eq.s32.totalorder %s11, 0
      %p31 = por %p29, %p30
      %p32 = scmp.ne.s32.totalorder %s21, %s24
      %p33 = scmp.eq.s32.totalorder %s16, 1
      %p34 = por %p32, %p33
      %p35 = scmp.ne.s32.totalorder %s24, %s25
      %p36 = scmp.eq.s32.totalorder %s16, 0
      %p37 = por %p35, %p36
      %p38 = scmp.ne.s32.totalorder %s24, %s25
      %p39 = scmp.eq.s32.totalorder %s17, 1
      %p40 = por %p38, %p39
      %p42 = scmp.ne.s32.totalorder %s25, %s41
      %p43 = scmp.eq.s32.totalorder %s17, 0
      %p44 = por %p42, %p43
      %s46 = sadd.s32 %s45, 1
      %p49 = scmp.eq.s32.totalorder %s11, 1
      %p50 = scmp.ne.s32.totalorder %s45, %s47
      %p51 = scmp.eq.s32.totalorder %s11, 0
      %p52 = por %p50, %p51
      %p53 = scmp.ne.s32.totalorder %s45, %s47
      %p54 = scmp.eq.s32.totalorder %s16, 1
      %p55 = por %p53, %p54
      %p56 = scmp.ne.s32.totalorder %s47, %s48
      %p57 = scmp.eq.s32.totalorder %s16, 0
      %p58 = por %p56, %p57
      %p59 = scmp.ne.s32.totalorder %s47, %s48
      %p60 = scmp.eq.s32.totalorder %s17, 1
      %p61 = por %p59, %p60
      %p63 = scmp.ne.s32.totalorder %s48, %s62
      %p64 = scmp.eq.s32.totalorder %s17, 0
      %p65 = por %p63, %p64
      %s67 = sadd.s32 %s66, 1
      %p70 = scmp.eq.s32.totalorder %s11, 1
      %p71 = scmp.ne.s32.totalorder %s66, %s68
      %p72 = scmp.eq.s32.totalorder %s11, 0
      %p73 = por %p71, %p72
      %p74 = scmp.ne.s32.totalorder %s66, %s68
      %p75 = scmp.eq.s32.totalorder %s16, 1
      %p76 = por %p74, %p75
      %p77 = scmp.ne.s32.totalorder %s68, %s69
      %p78 = scmp.eq.s32.totalorder %s16, 0
      %p79 = por %p77, %p78
      %p80 = scmp.ne.s32.totalorder %s68, %s69
      %p81 = scmp.eq.s32.totalorder %s17, 1
      %p82 = por %p80, %p81
      %p84 = scmp.ne.s32.totalorder %s69, %s83
      %p85 = scmp.eq.s32.totalorder %s17, 0
      %p86 = por %p84, %p85
      %s88 = sadd.s32 %s87, 1
      %p91 = scmp.eq.s32.totalorder %s11, 1
      %p92 = scmp.ne.s32.totalorder %s87, %s89
      %p93 = scmp.eq.s32.totalorder %s11, 0
      %p94 = por %p92, %p93
      %p95 = scmp.ne.s32.totalorder %s87, %s89
      %p96 = scmp.eq.s32.totalorder %s16, 1
      %p97 = por %p95, %p96
      %p98 = scmp.ne.s32.totalorder %s89, %s90
      %p99 = scmp.eq.s32.totalorder %s16, 0
      %p100 = por %p98, %p99
      %p101 = scmp.ne.s32.totalorder %s89, %s90
      %p102 = scmp.eq.s32.totalorder %s17, 1
      %p103 = por %p101, %p102
      %p105 = scmp.ne.s32.totalorder %s90, %s104
      %p106 = scmp.eq.s32.totalorder %s17, 0
      %p107 = por %p105, %p106
      %s109 = sadd.s32 %s108, 1
      %p112 = scmp.eq.s32.totalorder %s11, 1
      %p113 = scmp.ne.s32.totalorder %s108, %s110
      %p114 = scmp.eq.s32.totalorder %s11, 0
      %p115 = por %p113, %p114
      %p116 = scmp.ne.s32.totalorder %s108, %s110
      %p117 = scmp.eq.s32.totalorder %s16, 1
      %p118 = por %p116, %p117
      %p119 = scmp.ne.s32.totalorder %s110, %s111
      %p120 = scmp.eq.s32.totalorder %s16, 0
      %p121 = por %p119, %p120
      %p122 = scmp.ne.s32.totalorder %s110, %s111
      %p123 = scmp.eq.s32.totalorder %s17, 1
      %p124 = por %p122, %p123
      %p126 = scmp.ne.s32.totalorder %s111, %s125
      %p127 = scmp.eq.s32.totalorder %s17, 0
      %p128 = por %p126, %p127
      %s129 = ssub.s32 %s11, %s18
      %p130 = scmp.eq.s32.totalorder %s129, 0
      %s132 = sadd.s32 %s131, 1
      %s133 = scalar_select %p130, %s131, %s132
      %p136 = pneg %p130
      %p137 = scmp.eq.s32.totalorder %s11, 1
      %p138 = por %p136, %p137
      %p139 = scmp.ne.s32.totalorder %s131, %s134
      %p140 = scmp.eq.s32.totalorder %s11, 0
      %p141 = por %p139, %p140
      %p142 = scmp.ne.s32.totalorder %s131, %s134
      %p143 = scmp.eq.s32.totalorder %s16, 1
      %p144 = por %p142, %p143
      %p145 = scmp.ne.s32.totalorder %s134, %s135
      %p146 = scmp.eq.s32.totalorder %s16, 0
      %p147 = por %p145, %p146
      %p148 = scmp.ne.s32.totalorder %s134, %s135
      %p149 = scmp.eq.s32.totalorder %s17, 1
      %p150 = por %p148, %p149
      %p152 = scmp.ne.s32.totalorder %s135, %s151
      %p153 = scmp.eq.s32.totalorder %s17, 0
      %p154 = por %p152, %p153
      %p155 = scmp.le.s32.totalorder 1, %s11
      %p156 = scmp.lt.s32.totalorder %s11, 3
      %p157 = pnand %p155, %p156
      %p158 = pneg %p157
      // Predicated region
      $region9: #{mm_image_encoder_forward.1} parent=5 // pred_check
        _
      $region10: #{mm_image_encoder_forward.1} parent=5 // pred_check_branch
        %160 = sbr.rel (%p157) target = $region12
      $region11: #{mm_image_encoder_forward.1} parent=5 // pred_region
        %s161 = ssub.s32 %s11, 1
        // Predicated region
        $region13: #{mm_image_encoder_forward.1} parent=11 // pred_check
          %p162 = pneg %p58
        $region14: #{mm_image_encoder_forward.1} parent=11 // pred_check_branch
          %164 = sbr.rel (%p162) target = $region16
        $region15: #{mm_image_encoder_forward.1} parent=11 // pred_region
          _
        $region16: #{mm_image_encoder_forward.1} parent=11 // pred_fallthru
          _
        // Predicated region
        $region17: #{mm_image_encoder_forward.1} parent=11 // pred_check
          %p165 = pneg %p79
        $region18: #{mm_image_encoder_forward.1} parent=11 // pred_check_branch
          %167 = sbr.rel (%p165) target = $region20
        $region19: #{mm_image_encoder_forward.1} parent=11 // pred_region
          _
        $region20: #{mm_image_encoder_forward.1} parent=11 // pred_fallthru
          _
        // Predicated region
        $region21: #{mm_image_encoder_forward.1} parent=11 // pred_check
          %p168 = pneg %p100
        $region22: #{mm_image_encoder_forward.1} parent=11 // pred_check_branch
          %170 = sbr.rel (%p168) target = $region24
        $region23: #{mm_image_encoder_forward.1} parent=11 // pred_region
          _
        $region24: #{mm_image_encoder_forward.1} parent=11 // pred_fallthru
          _
        // Predicated region
        $region25: #{mm_image_encoder_forward.1} parent=11 // pred_check
          %p171 = pneg %p121
        $region26: #{mm_image_encoder_forward.1} parent=11 // pred_check_branch
          %173 = sbr.rel (%p171) target = $region28
        $region27: #{mm_image_encoder_forward.1} parent=11 // pred_region
          _
        $region28: #{mm_image_encoder_forward.1} parent=11 // pred_fallthru
          _
      $region12: #{mm_image_encoder_forward.1} parent=5 // pred_fallthru
        _
      %p174 = scmp.lt.s32.totalorder %s11, 2
      // Predicated region
      $region29: #{mm_image_encoder_forward.1} parent=5 // pred_check
        %p175 = pneg %p174
      $region30: #{mm_image_encoder_forward.1} parent=5 // pred_check_branch
        %177 = sbr.rel (%p175) target = $region32
      $region31: #{mm_image_encoder_forward.1} parent=5 // pred_region
        // Predicated region
        $region33: #{mm_image_encoder_forward.1} parent=31 // pred_check
          %p178 = pneg %p31
        $region34: #{mm_image_encoder_forward.1} parent=31 // pred_check_branch
          %180 = sbr.rel (%p178) target = $region36
        $region35: #{mm_image_encoder_forward.1} parent=31 // pred_region
          %s181 = smul.u32 13, %s11
          %s182 = ssub.s32 25, %s181
          %p183 = scmp.lt.s32.totalorder %s182, 13
          %s184 = scalar_select %p183, %s182, 13
          %s185 = smul.u32 128, %s184
          %s186 = smul.u32 %s185, 2
          %p187 = scmp.lt.s32.totalorder %s181, 24
          %s188 = scalar_select %p187, %s181, 24
          %s189 = smul.addr %s188, 2
          %s190 = smul.addr %s189, 8
          %s191 = scalar_lea.vmem %s0, %s190
          %s192 = smul.u32 13, %s11
          %s193 = ssub.s32 25, %s192
          %p194 = scmp.lt.s32.totalorder %s193, 13
          %s195 = scalar_select %p194, %s193, 13
          %s196 = smul.u32 128, %s195
          %s197 = smul.u32 %s196, 2
        $region36: #{mm_image_encoder_forward.1} parent=31 // pred_fallthru
          _
      $region32: #{mm_image_encoder_forward.1} parent=5 // pred_fallthru
        _
      %p198 = scmp.le.s32.totalorder 1, %s11
      %p199 = scmp.lt.s32.totalorder %s11, 3
      %p200 = pnand %p198, %p199
      %p201 = pneg %p200
      // Predicated region
      $region37: #{mm_image_encoder_forward.1} parent=5 // pred_check
        _
      $region38: #{mm_image_encoder_forward.1} parent=5 // pred_check_branch
        %203 = sbr.rel (%p200) target = $region40
      $region39: #{mm_image_encoder_forward.1} parent=5 // pred_region
        %s204 = ssub.s32 %s11, 1
        %s205 = smul.u32 13, %s16
        %s206 = ssub.s32 25, %s205
        %p207 = scmp.lt.s32.totalorder %s206, 13
        %s208 = scalar_select %p207, %s206, 13
        %s209 = smul.u32 128, %s208
        %s210 = smul.u32 %s209, 2
        %p211 = scmp.lt.s32.totalorder %s205, 24
        %s212 = scalar_select %p211, %s205, 24
        %s213 = smul.addr %s212, 2
        %s214 = smul.addr %s213, 8
        %s215 = scalar_lea.vmem %s0, %s214
        %p216 = pneg %p37
        %p217 = pneg %p34
        %p218 = pneg %p58
        %p219 = pneg %p55
        %p220 = pneg %p79
        %p221 = pneg %p76
        %p222 = pneg %p100
        %p223 = pneg %p97
        %p224 = pneg %p121
        %p225 = pneg %p118
        %p226 = pneg %p147
        %p227 = pneg %p144
        %s228 = sand.u32 %s134, 1
        %s229 = sand.u32 %s134, 1
        %s230 = smul.addr %s229, 104
        %s231 = scalar_lea.vmem [#allocation2], %s230
        %s232 = smul.u32 13, %s16
        %s233 = ssub.s32 25, %s232
        %p234 = scmp.lt.s32.totalorder %s233, 13
        %s235 = scalar_select %p234, %s233, 13
        %s236 = smul.u32 128, %s235
        %s237 = smul.u32 %s236, 2
        %p238 = scmp.lt.s32.totalorder %s232, 24
        %s239 = scalar_select %p238, %s232, 24
        %s240 = smul.addr %s239, 2
        %s241 = smul.addr %s240, 8
        %s242 = scalar_lea.vmem %s0, %s241
        %s243 = smul.u32 13, %s16
        %s244 = ssub.s32 25, %s243
        %p245 = scmp.lt.s32.totalorder %s244, 13
        %s246 = scalar_select %p245, %s244, 13
        %s247 = smul.u32 128, %s246
        %s248 = smul.u32 %s247, 2
        %s249 = smul.u32 13, %s16
        %s250 = ssub.s32 25, %s249
        %p251 = scmp.lt.s32.totalorder %s250, 13
        %s252 = scalar_select %p251, %s250, 13
        %s253 = smul.u32 128, %s252
        %v255 = vld [vmem:[%s242] sm:$0xff]
        %v256 = vld [vmem:[%s242 + $0x8] sm:$0xff]
        %v257 = vld [vmem:[%s242 + $0x10] sm:$0xff]
        %v258 = vld [vmem:[%s242 + $0x18] sm:$0xff]
        %v259 = vld [vmem:[%s242 + $0x20] sm:$0xff]
        %v260 = vld [vmem:[%s242 + $0x28] sm:$0xff]
        %v261 = vld [vmem:[%s242 + $0x30] sm:$0xff]
        %v262 = vld [vmem:[%s242 + $0x38] sm:$0xff]
        %v263 = vld [vmem:[%s242 + $0x40] sm:$0xff]
        %v264 = vld [vmem:[%s242 + $0x48] sm:$0xff]
        %v265 = vld [vmem:[%s242 + $0x50] sm:$0xff]
        %v266 = vld [vmem:[%s242 + $0x58] sm:$0xff]
        %v267 = vld [vmem:[%s242 + $0x60] sm:$0xff]
        %v268 = vld [vmem:[%s242 + $0x68] sm:$0xff]
        %v269 = vld [vmem:[%s242 + $0x70] sm:$0xff]
        %v270 = vld [vmem:[%s242 + $0x78] sm:$0xff]
        %v271 = vld [vmem:[%s242 + $0x80] sm:$0xff]
        %v272 = vld [vmem:[%s242 + $0x88] sm:$0xff]
        %v273 = vld [vmem:[%s242 + $0x90] sm:$0xff]
        %v274 = vld [vmem:[%s242 + $0x98] sm:$0xff]
        %v275 = vld [vmem:[%s242 + $0xa0] sm:$0xff]
        %v276 = vld [vmem:[%s242 + $0xa8] sm:$0xff]
        %v277 = vld [vmem:[%s242 + $0xb0] sm:$0xff]
        %v278 = vld [vmem:[%s242 + $0xb8] sm:$0xff]
        %v279 = vld [vmem:[%s242 + $0xc0] sm:$0xff]
        %v280 = vld [vmem:[%s242 + $0xc8] sm:$0xff]
        %v281 = vpack.c.bf16 %v257, %v255
        %v282 = vpack.c.bf16 %v258, %v256
        %v283 = vpack.c.bf16 %v261, %v259
        %v284 = vpack.c.bf16 %v262, %v260
        %v285 = vpack.c.bf16 %v265, %v263
        %v286 = vpack.c.bf16 %v266, %v264
        %v287 = vpack.c.bf16 %v269, %v267
        %v288 = vpack.c.bf16 %v270, %v268
        %v289 = vpack.c.bf16 %v273, %v271
        %v290 = vpack.c.bf16 %v274, %v272
        %v291 = vpack.c.bf16 %v277, %v275
        %v292 = vpack.c.bf16 %v278, %v276
        %v293 = vpack.c.bf16 %v279, %v279
        %v294 = vpack.c.bf16 %v280, %v280
        %v295 = vld [vmem:[%s1] sm:$0xf]
        %v296 = vld [vmem:[%s1 + $0x4] sm:$0xf]
        %v297 = vld [vmem:[%s1 + $0x8] sm:$0xf]
        %v298 = vld [vmem:[%s1 + $0xc] sm:$0xf]
        %v299 = vld [vmem:[%s1 + $0x10] sm:$0xf]
        %v300 = vld [vmem:[%s1 + $0x14] sm:$0xf]
        %v301 = vld [vmem:[%s1 + $0x18] sm:$0xf]
        %v302 = vld [vmem:[%s1 + $0x1c] sm:$0xf]
        %v303 = vld [vmem:[%s1 + $0x20] sm:$0xf]
        %v304 = vld [vmem:[%s1 + $0x24] sm:$0xf]
        %v305 = vld [vmem:[%s1 + $0x28] sm:$0xf]
        %v306 = vld [vmem:[%s1 + $0x2c] sm:$0xf]
        %v307 = vld [vmem:[%s1 + $0x30] sm:$0xf]
        %v308 = vld [vmem:[%s1 + $0x34] sm:$0xf]
        %v309 = vld [vmem:[%s1 + $0x38] sm:$0xf]
        %v310 = vld [vmem:[%s1 + $0x3c] sm:$0xf]
        %v311 = vld [vmem:[%s1 + $0x40] sm:$0xf]
        %v312 = vld [vmem:[%s1 + $0x44] sm:$0xf]
        %v313 = vld [vmem:[%s1 + $0x48] sm:$0x7]
        %v314 = vld [vmem:[%s2] sm:$0x1]
        %v316 = vlaneseq
        %v317 = vshrl.u32 %v316, 7
        %v318 = vsub.s32 0, %v317
        %v319 = vrot.slane %v314, %v318
        %v340 = vunpack.c.l.b16 %v295
        %v341 = vunpack.c.l.b16 %v296
        %v342 = vunpack.c.l.b16 %v297
        %v343 = vunpack.c.l.b16 %v298
        %v344 = vunpack.c.l.b16 %v299
        %v345 = vunpack.c.l.b16 %v300
        %v346 = vunpack.c.l.b16 %v301
        %v347 = vunpack.c.l.b16 %v302
        %v348 = vunpack.c.l.b16 %v303
        %v349 = vunpack.c.l.b16 %v304
        %v350 = vunpack.c.l.b16 %v305
        %v351 = vunpack.c.l.b16 %v306
        %v352 = vunpack.c.l.b16 %v307
        %v353 = vunpack.c.l.b16 %v308
        %v354 = vunpack.c.l.b16 %v309
        %v355 = vunpack.c.l.b16 %v310
        %v356 = vunpack.c.l.b16 %v311
        %v357 = vunpack.c.l.b16 %v312
        %v358 = vunpack.c.l.b16 %v313
        %v359 = vpack.c.b16 %v341, %v340
        %v360 = vpack.c.b16 %v343, %v342
        %v361 = vpack.c.b16 %v345, %v344
        %v362 = vpack.c.b16 %v347, %v346
        %v363 = vpack.c.b16 %v349, %v348
        %v364 = vpack.c.b16 %v351, %v350
        %v365 = vpack.c.b16 %v353, %v352
        %v366 = vpack.c.b16 %v355, %v354
        %v367 = vpack.c.b16 %v357, %v356
        %v368 = vpack.c.b16 %v358, %v358
        %vm378 = vcmask 179200
        %v380 = vsel %vm378, %v282, 0
        %v383 = vsel %vm378, %v284, 0
        %v386 = vsel %vm378, %v286, 0
        %v389 = vsel %vm378, %v288, 0
        %v392 = vsel %vm378, %v290, 0
        %v395 = vsel %vm378, %v292, 0
        %v398 = vsel %vm378, %v294, 0
        %vm400 = vcmask 1042432
        %v402 = vsel %vm400, %v368, 0
        %404 = vmatprep.subr.bf16.mxu0 0
        %405 = vmatpush1.bf16.msra.mxu0 %v359
        %406 = vmatprep.subr.bf16.mxu0 0
        %407 = vmatpush1.bf16.msra.mxu0 %v360
        %408 = vmatprep.subr.bf16.mxu0 0
        %409 = vmatpush1.bf16.msra.mxu0 %v361
        %410 = vmatprep.subr.bf16.mxu0 0
        %411 = vmatpush1.bf16.msra.mxu0 %v362
        %412 = vmatprep.subr.bf16.mxu0 0
        %413 = vmatpush1.bf16.msra.mxu0 %v363
        %414 = vmatprep.subr.bf16.mxu0 0
        %415 = vmatpush1.bf16.msra.mxu0 %v364
        %416 = vmatprep.subr.bf16.mxu0 0
        %417 = vmatpush1.bf16.msra.mxu0 %v365
        %418 = vmatprep.subr.bf16.mxu0 0
        %419 = vmatpush1.bf16.msra.mxu0 %v366
        %420 = vmatprep.subr.bf16.mxu0 0
        %421 = vmatpush1.bf16.msra.mxu0 %v367
        %422 = vmatprep.subr.bf16.mxu0 0
        %423 = vmatpush1.bf16.msra.mxu0 %v402
        %424 = vmatprep.subr.bf16.mxu0 0
        %425 = vmatpush1.bf16.msra.mxu0 0
        %426 = vmatprep.subr.bf16.mxu0 0
        %427 = vmatpush1.bf16.msra.mxu0 0
        %428 = vmatprep.subr.bf16.mxu0 0
        %429 = vmatpush1.bf16.msra.mxu0 0
        %430 = vmatprep.subr.bf16.mxu0 0
        %431 = vmatpush1.bf16.msra.mxu0 0
        %432 = vmatprep.subr.bf16.mxu0 0
        %433 = vmatpush1.bf16.msra.mxu0 0
        %434 = vmatprep.subr.bf16.mxu0 0
        %435 = vmatpush1.bf16.msra.mxu0 0
        %436 = vmatprep.mubr.bf16.mxu0 %v380
        %437 = vmatmul.mubr.bf16.gmra.mrb[0].mxu0 %v281
        %v438 = vpop.f32.mrb[0].mxu0
        %v439 = vadd.f32 %v319, %v438
        %v440 = vpop.f32.mrb[0].mxu0
        %v441 = vpop.f32.mrb[0].mxu0
        %v442 = vadd.f32 %v319, %v441
        %v443 = vpop.f32.mrb[0].mxu0
        %444 = vmatprep.mubr.bf16.mxu0 %v383
        %445 = vmatmul.mubr.bf16.gmra.mrb[0].mxu0 %v283
        %v446 = vpop.f32.mrb[0].mxu0
        %v447 = vadd.f32 %v319, %v446
        %v448 = vpop.f32.mrb[0].mxu0
        %v449 = vpop.f32.mrb[0].mxu0
        %v450 = vadd.f32 %v319, %v449
        %v451 = vpop.f32.mrb[0].mxu0
        %452 = vmatprep.mubr.bf16.mxu0 %v386
        %453 = vmatmul.mubr.bf16.gmra.mrb[0].mxu0 %v285
        %v454 = vpop.f32.mrb[0].mxu0
        %v455 = vadd.f32 %v319, %v454
        %v456 = vpop.f32.mrb[0].mxu0
        %v457 = vpop.f32.mrb[0].mxu0
        %v458 = vadd.f32 %v319, %v457
        %v459 = vpop.f32.mrb[0].mxu0
        %460 = vmatprep.mubr.bf16.mxu0 %v389
        %461 = vmatmul.mubr.bf16.gmra.mrb[0].mxu0 %v287
        %v462 = vpop.f32.mrb[0].mxu0
        %v463 = vadd.f32 %v319, %v462
        %v464 = vpop.f32.mrb[0].mxu0
        %v465 = vpop.f32.mrb[0].mxu0
        %v466 = vadd.f32 %v319, %v465
        %v467 = vpop.f32.mrb[0].mxu0
        %468 = vmatprep.mubr.bf16.mxu0 %v392
        %469 = vmatmul.mubr.bf16.gmra.mrb[0].mxu0 %v289
        %v470 = vpop.f32.mrb[0].mxu0
        %v471 = vadd.f32 %v319, %v470
        %v472 = vpop.f32.mrb[0].mxu0
        %v473 = vpop.f32.mrb[0].mxu0
        %v474 = vadd.f32 %v319, %v473
        %v475 = vpop.f32.mrb[0].mxu0
        %476 = vmatprep.mubr.bf16.mxu0 %v395
        %477 = vmatmul.mubr.bf16.gmra.mrb[0].mxu0 %v291
        %v478 = vpop.f32.mrb[0].mxu0
        %v479 = vadd.f32 %v319, %v478
        %v480 = vpop.f32.mrb[0].mxu0
        %v481 = vpop.f32.mrb[0].mxu0
        %v482 = vadd.f32 %v319, %v481
        %v483 = vpop.f32.mrb[0].mxu0
        %484 = vmatprep.mubr.bf16.mxu0 %v398
        %485 = vmatmul.mubr.bf16.gmra.mrb[0].mxu0 %v293
        %v486 = vpop.f32.mrb[0].mxu0
        %v487 = vadd.f32 %v319, %v486
        %v488 = vpop.f32.mrb[0].mxu0
        %v489 = vpop.f32.mrb[0].mxu0
        %v490 = vpop.f32.mrb[0].mxu0
        %491 = vdwg.mxu0
        %v492 = vmax.f32 %v439, 0.0
        %v493 = vmax.f32 %v442, 0.0
        %v494 = vmax.f32 %v447, 0.0
        %v495 = vmax.f32 %v450, 0.0
        %v496 = vmax.f32 %v455, 0.0
        %v497 = vmax.f32 %v458, 0.0
        %v498 = vmax.f32 %v463, 0.0
        %v499 = vmax.f32 %v466, 0.0
        %v500 = vmax.f32 %v471, 0.0
        %v501 = vmax.f32 %v474, 0.0
        %v502 = vmax.f32 %v479, 0.0
        %v503 = vmax.f32 %v482, 0.0
        %v504 = vmax.f32 %v487, 0.0
        %v505 = vpack.c.bf16 %v493, %v492
        %v506 = vpack.c.bf16 %v495, %v494
        %v507 = vpack.c.bf16 %v497, %v496
        %v508 = vpack.c.bf16 %v499, %v498
        %v509 = vpack.c.bf16 %v501, %v500
        %v510 = vpack.c.bf16 %v503, %v502
        %v511 = vpack.c.bf16 %v504, %v504
        %v512 = vld [vmem:[%s3] sm:$0xf]
        %v513 = vld [vmem:[%s3 + $0x4] sm:$0xf]
        %v514 = vld [vmem:[%s3 + $0x8] sm:$0xf]
        %v515 = vld [vmem:[%s3 + $0xc] sm:$0xf]
        %v516 = vld [vmem:[%s3 + $0x10] sm:$0xf]
        %v517 = vld [vmem:[%s3 + $0x14] sm:$0xf]
        %v518 = vld [vmem:[%s3 + $0x18] sm:$0xf]
        %v519 = vld [vmem:[%s3 + $0x1c] sm:$0xf]
        %v520 = vld [vmem:[%s4] sm:$0x1]
        %v522 = vlaneseq
        %v523 = vshrl.u32 %v522, 7
        %v524 = vsub.s32 0, %v523
        %v525 = vrot.slane %v520, %v524
        %v535 = vunpack.c.l.b16 %v512
        %v536 = vunpack.c.l.b16 %v513
        %v537 = vunpack.c.l.b16 %v514
        %v538 = vunpack.c.l.b16 %v515
        %v539 = vunpack.c.l.b16 %v516
        %v540 = vunpack.c.l.b16 %v517
        %v541 = vunpack.c.l.b16 %v518
        %v542 = vunpack.c.l.b16 %v519
        %v543 = vpack.c.b16 %v536, %v535
        %v544 = vpack.c.b16 %v538, %v537
        %v545 = vpack.c.b16 %v540, %v539
        %v546 = vpack.c.b16 %v542, %v541
        %vm551 = vcmask 523264
        %v553 = vsel %vm551, %v505, 0
        %v556 = vsel %vm551, %v506, 0
        %v559 = vsel %vm551, %v507, 0
        %v562 = vsel %vm551, %v508, 0
        %v565 = vsel %vm551, %v509, 0
        %v568 = vsel %vm551, %v510, 0
        %v571 = vsel %vm551, %v511, 0
        %573 = vmatprep.subr.bf16.mxu0 0
        %574 = vmatpush1.bf16.msra.mxu0 %v543
        %575 = vmatprep.subr.bf16.mxu0 0
        %576 = vmatpush1.bf16.msra.mxu0 %v544
        %577 = vmatprep.subr.bf16.mxu0 0
        %578 = vmatpush1.bf16.msra.mxu0 %v545
        %579 = vmatprep.subr.bf16.mxu0 0
        %580 = vmatpush1.bf16.msra.mxu0 %v546
        %581 = vmatprep.subr.bf16.mxu0 0
        %582 = vmatpush1.bf16.msra.mxu0 0
        %583 = vmatprep.subr.bf16.mxu0 0
        %584 = vmatpush1.bf16.msra.mxu0 0
        %585 = vmatprep.subr.bf16.mxu0 0
        %586 = vmatpush1.bf16.msra.mxu0 0
        %587 = vmatprep.subr.bf16.mxu0 0
        %588 = vmatpush1.bf16.msra.mxu0 0
        %589 = vmatprep.subr.bf16.mxu0 0
        %590 = vmatpush1.bf16.msra.mxu0 0
        %591 = vmatprep.subr.bf16.mxu0 0
        %592 = vmatpush1.bf16.msra.mxu0 0
        %593 = vmatprep.subr.bf16.mxu0 0
        %594 = vmatpush1.bf16.msra.mxu0 0
        %595 = vmatprep.subr.bf16.mxu0 0
        %596 = vmatpush1.bf16.msra.mxu0 0
        %597 = vmatprep.subr.bf16.mxu0 0
        %598 = vmatpush1.bf16.msra.mxu0 0
        %599 = vmatprep.subr.bf16.mxu0 0
        %600 = vmatpush1.bf16.msra.mxu0 0
        %601 = vmatprep.subr.bf16.mxu0 0
        %602 = vmatpush1.bf16.msra.mxu0 0
        %603 = vmatprep.subr.bf16.mxu0 0
        %604 = vmatpush1.bf16.msra.mxu0 0
        %605 = vmatprep.mubr.bf16.mxu0 0
        %606 = vmatmul.mubr.bf16.gmra.mrb[0].mxu0 %v553
        %v607 = vpop.f32.mrb[0].mxu0
        %v608 = vadd.f32 %v525, %v607
        %v609 = vpop.f32.mrb[0].mxu0
        %v610 = vpop.f32.mrb[0].mxu0
        %v611 = vadd.f32 %v525, %v610
        %v612 = vpop.f32.mrb[0].mxu0
        %613 = vmatprep.mubr.bf16.mxu0 0
        %614 = vmatmul.mubr.bf16.gmra.mrb[0].mxu0 %v556
        %v615 = vpop.f32.mrb[0].mxu0
        %v616 = vadd.f32 %v525, %v615
        %v617 = vpop.f32.mrb[0].mxu0
        %v618 = vpop.f32.mrb[0].mxu0
        %v619 = vadd.f32 %v525, %v618
        %v620 = vpop.f32.mrb[0].mxu0
        %621 = vmatprep.mubr.bf16.mxu0 0
        %622 = vmatmul.mubr.bf16.gmra.mrb[0].mxu0 %v559
        %v623 = vpop.f32.mrb[0].mxu0
        %v624 = vadd.f32 %v525, %v623
        %v625 = vpop.f32.mrb[0].mxu0
        %v626 = vpop.f32.mrb[0].mxu0
        %v627 = vadd.f32 %v525, %v626
        %v628 = vpop.f32.mrb[0].mxu0
        %629 = vmatprep.mubr.bf16.mxu0 0
        %630 = vmatmul.mubr.bf16.gmra.mrb[0].mxu0 %v562
        %v631 = vpop.f32.mrb[0].mxu0
        %v632 = vadd.f32 %v525, %v631
        %v633 = vpop.f32.mrb[0].mxu0
        %v634 = vpop.f32.mrb[0].mxu0
        %v635 = vadd.f32 %v525, %v634
        %v636 = vpop.f32.mrb[0].mxu0
        %637 = vmatprep.mubr.bf16.mxu0 0
        %638 = vmatmul.mubr.bf16.gmra.mrb[0].mxu0 %v565
        %v639 = vpop.f32.mrb[0].mxu0
        %v640 = vadd.f32 %v525, %v639
        %v641 = vpop.f32.mrb[0].mxu0
        %v642 = vpop.f32.mrb[0].mxu0
        %v643 = vadd.f32 %v525, %v642
        %v644 = vpop.f32.mrb[0].mxu0
        %645 = vmatprep.mubr.bf16.mxu0 0
        %646 = vmatmul.mubr.bf16.gmra.mrb[0].mxu0 %v568
        %v647 = vpop.f32.mrb[0].mxu0
        %v648 = vadd.f32 %v525, %v647
        %v649 = vpop.f32.mrb[0].mxu0
        %v650 = vpop.f32.mrb[0].mxu0
        %v651 = vadd.f32 %v525, %v650
        %v652 = vpop.f32.mrb[0].mxu0
        %653 = vmatprep.mubr.bf16.mxu0 0
        %654 = vmatmul.mubr.bf16.gmra.mrb[0].mxu0 %v571
        %v655 = vpop.f32.mrb[0].mxu0
        %v656 = vadd.f32 %v525, %v655
        %v657 = vpop.f32.mrb[0].mxu0
        %v658 = vpop.f32.mrb[0].mxu0
        %v659 = vpop.f32.mrb[0].mxu0
        %660 = vdwg.mxu0
        %v661 = vmax.f32 %v608, 0.0
        %v662 = vmax.f32 %v611, 0.0
        %v663 = vmax.f32 %v616, 0.0
        %v664 = vmax.f32 %v619, 0.0
        %v665 = vmax.f32 %v624, 0.0
        %v666 = vmax.f32 %v627, 0.0
        %v667 = vmax.f32 %v632, 0.0
        %v668 = vmax.f32 %v635, 0.0
        %v669 = vmax.f32 %v640, 0.0
        %v670 = vmax.f32 %v643, 0.0
        %v671 = vmax.f32 %v648, 0.0
        %v672 = vmax.f32 %v651, 0.0
        %v673 = vmax.f32 %v656, 0.0
        %vm674 = vcmask 130048
        %675 = vst.msk [vmem:[%s231] sm:$0xff] %vm674, %v661
        %676 = vst.msk [vmem:[%s231 + $0x8] sm:$0xff] %vm674, %v662
        %677 = vst.msk [vmem:[%s231 + $0x10] sm:$0xff] %vm674, %v663
        %678 = vst.msk [vmem:[%s231 + $0x18] sm:$0xff] %vm674, %v664
        %679 = vst.msk [vmem:[%s231 + $0x20] sm:$0xff] %vm674, %v665
        %680 = vst.msk [vmem:[%s231 + $0x28] sm:$0xff] %vm674, %v666
        %681 = vst.msk [vmem:[%s231 + $0x30] sm:$0xff] %vm674, %v667
        %682 = vst.msk [vmem:[%s231 + $0x38] sm:$0xff] %vm674, %v668
        %683 = vst.msk [vmem:[%s231 + $0x40] sm:$0xff] %vm674, %v669
        %684 = vst.msk [vmem:[%s231 + $0x48] sm:$0xff] %vm674, %v670
        %685 = vst.msk [vmem:[%s231 + $0x50] sm:$0xff] %vm674, %v671
        %686 = vst.msk [vmem:[%s231 + $0x58] sm:$0xff] %vm674, %v672
        %687 = vst.msk [vmem:[%s231 + $0x60] sm:$0xff] %vm674, %v673
        %s688 = sand.u32 %s134, 1
        %s689 = sand.u32 %s134, 1
        %s690 = smul.addr %s689, 104
        %s691 = scalar_lea.vmem [#allocation2], %s690
        // Predicated region
        $region41: #{mm_image_encoder_forward.1} parent=39 // pred_check
          %p692 = pneg %p144
        $region42: #{mm_image_encoder_forward.1} parent=39 // pred_check_branch
          %694 = sbr.rel (%p692) target = $region44
        $region43: #{mm_image_encoder_forward.1} parent=39 // pred_region
          %s695 = smul.u32 13, %s16
          %s696 = ssub.s32 25, %s695
          %p697 = scmp.lt.s32.totalorder %s696, 13
          %s698 = scalar_select %p697, %s696, 13
          %s699 = smul.u32 128, %s698
          %p700 = scmp.ne.s32.totalorder 0, %s699
          %s701 = smul.addr %s695, 8
          %s702 = scalar_lea.vmem %s5, %s701
          // Predicated region
          $region45: #{mm_image_encoder_forward.1} parent=43 // pred_check
            %p703 = pneg %p700
          $region46: #{mm_image_encoder_forward.1} parent=43 // pred_check_branch
            %705 = sbr.rel (%p703) target = $region48
          $region47: #{mm_image_encoder_forward.1} parent=43 // pred_region
            // Predicated region
            $region49: #{mm_image_encoder_forward.1} parent=47 // pred_check
              _
            $region50: #{mm_image_encoder_forward.1} parent=47 // pred_check_branch
              %707 = sbr.rel (0) target = $region52
            $region51: #{mm_image_encoder_forward.1} parent=47 // pred_region
              // Predicated region
              $region71: #{mm_image_encoder_forward.1} parent=51 // pred_check
                _
              $region72: #{mm_image_encoder_forward.1} parent=51 // pred_check_branch
                %781 = sbr.rel (0) target = $region74
              $region73: #{mm_image_encoder_forward.1} parent=51 // pred_region
                %s782 = sdiv.u32.pop %s698, 13
                %s783 = srem.u32.pop %s698, 13
                // While loop
                $region75: #{mm_image_encoder_forward.1} parent=73 // loop_pre_header
                  _
                $region76: #{mm_image_encoder_forward.1} parent=73 // loop_header
                  %s785 = sphi 0, %s787
                  %p786 = scmp.ge.s32.totalorder %s785, %s782
                  %s790 = sphi 0, %s821
                  %s791 = sphi %s691, %s824
                  %s792 = sphi %s702, %s825
                $region77: #{mm_image_encoder_forward.1} parent=73 // loop_header_branch
                  %789 = sbr.rel (%p786) target = $region81
                $region78: #{mm_image_encoder_forward.1} parent=73 // loop_body
                  %v793 = vld [vmem:[%s791] sm:$0xff]
                  %794 = vst [vmem:[%s792] sm:$0xff] %v793
                  %v795 = vld [vmem:[%s791 + $0x8] sm:$0xff]
                  %796 = vst [vmem:[%s792 + $0x8] sm:$0xff] %v795
                  %v797 = vld [vmem:[%s791 + $0x10] sm:$0xff]
                  %798 = vst [vmem:[%s792 + $0x10] sm:$0xff] %v797
                  %v799 = vld [vmem:[%s791 + $0x18] sm:$0xff]
                  %800 = vst [vmem:[%s792 + $0x18] sm:$0xff] %v799
                  %v801 = vld [vmem:[%s791 + $0x20] sm:$0xff]
                  %802 = vst [vmem:[%s792 + $0x20] sm:$0xff] %v801
                  %v803 = vld [vmem:[%s791 + $0x28] sm:$0xff]
                  %804 = vst [vmem:[%s792 + $0x28] sm:$0xff] %v803
                  %v805 = vld [vmem:[%s791 + $0x30] sm:$0xff]
                  %806 = vst [vmem:[%s792 + $0x30] sm:$0xff] %v805
                  %v807 = vld [vmem:[%s791 + $0x38] sm:$0xff]
                  %808 = vst [vmem:[%s792 + $0x38] sm:$0xff] %v807
                  %v809 = vld [vmem:[%s791 + $0x40] sm:$0xff]
                  %810 = vst [vmem:[%s792 + $0x40] sm:$0xff] %v809
                  %v811 = vld [vmem:[%s791 + $0x48] sm:$0xff]
                  %812 = vst [vmem:[%s792 + $0x48] sm:$0xff] %v811
                  %v813 = vld [vmem:[%s791 + $0x50] sm:$0xff]
                  %814 = vst [vmem:[%s792 + $0x50] sm:$0xff] %v813
                  %v815 = vld [vmem:[%s791 + $0x58] sm:$0xff]
                  %816 = vst [vmem:[%s792 + $0x58] sm:$0xff] %v815
                  %v817 = vld [vmem:[%s791 + $0x60] sm:$0xff]
                  %818 = vst [vmem:[%s792 + $0x60] sm:$0xff] %v817
                  %s819 = sadd.s32 1, %s790
                  %p820 = scmp.ge.s32.totalorder %s819, %s782
                  %s821 = scalar_select %p820, 0, %s819
                  %s822 = smul.u32 %s821, 104
                  %s823 = smul.u32 %s821, 104
                  %s824 = scalar_lea.vmem %s691, %s822 [#allocation2]
                  %s825 = scalar_lea.vmem %s702, %s823
                $region79: #{mm_image_encoder_forward.1} parent=73 // loop_footer
                  %s787 = sadd.s32 %s785, 1
                $region80: #{mm_image_encoder_forward.1} parent=73 // loop_footer_branch
                  %784 = sbr.rel target = $region76
                $region81: #{mm_image_encoder_forward.1} parent=73 // loop_exit
                  _
                %s826 = sdiv.u32.pop %s698, 13
                %s827 = srem.u32.pop %s698, 13
                %s828 = smul.u32 %s826, 13
                %s829 = smul.u32 8, %s828
                %s830 = scalar_lea.vmem %s691, %s829 [#allocation2]
                %s831 = smul.u32 8, %s828
                %s832 = scalar_lea.vmem %s702, %s831
                // While loop
                $region82: #{mm_image_encoder_forward.1} parent=73 // loop_pre_header
                  _
                $region83: #{mm_image_encoder_forward.1} parent=73 // loop_header
                  %s834 = sphi 0, %s836
                  %p835 = scmp.ge.s32.totalorder %s834, %s827
                  %s839 = sphi 0, %s846
                  %s840 = sphi %s830, %s849
                  %s841 = sphi %s832, %s850
                $region84: #{mm_image_encoder_forward.1} parent=73 // loop_header_branch
                  %838 = sbr.rel (%p835) target = $region88
                $region85: #{mm_image_encoder_forward.1} parent=73 // loop_body
                  %v842 = vld [vmem:[%s840] sm:$0xff]
                  %843 = vst [vmem:[%s841] sm:$0xff] %v842
                  %s844 = sadd.s32 1, %s839
                  %p845 = scmp.ge.s32.totalorder %s844, %s827
                  %s846 = scalar_select %p845, 0, %s844
                  %s847 = smul.u32 %s846, 8
                  %s848 = smul.u32 %s846, 8
                  %s849 = scalar_lea.vmem %s830, %s847 [#allocation2]
                  %s850 = scalar_lea.vmem %s832, %s848
                $region86: #{mm_image_encoder_forward.1} parent=73 // loop_footer
                  %s836 = sadd.s32 %s834, 1
                $region87: #{mm_image_encoder_forward.1} parent=73 // loop_footer_branch
                  %833 = sbr.rel target = $region83
                $region88: #{mm_image_encoder_forward.1} parent=73 // loop_exit
                  _
              $region74: #{mm_image_encoder_forward.1} parent=51 // pred_fallthru
                _
              // Predicated region
              $region89: #{mm_image_encoder_forward.1} parent=51 // pred_check
                _
              $region90: #{mm_image_encoder_forward.1} parent=51 // pred_check_branch
                %852 = sbr.rel target = $region92
              $region91: #{mm_image_encoder_forward.1} parent=51 // pred_region
                _
              $region92: #{mm_image_encoder_forward.1} parent=51 // pred_fallthru
                _
            $region52: #{mm_image_encoder_forward.1} parent=47 // pred_fallthru
              _
            // Predicated region
            $region53: #{mm_image_encoder_forward.1} parent=47 // pred_check
              _
            $region54: #{mm_image_encoder_forward.1} parent=47 // pred_check_branch
              %709 = sbr.rel target = $region56
            $region55: #{mm_image_encoder_forward.1} parent=47 // pred_region
              %s711 = sdiv.u32.pop %s698, 13
              %s712 = srem.u32.pop %s698, 13
              // While loop
              $region57: #{mm_image_encoder_forward.1} parent=55 // loop_pre_header
                _
              $region58: #{mm_image_encoder_forward.1} parent=55 // loop_header
                %s714 = sphi 0, %s716
                %p715 = scmp.ge.s32.totalorder %s714, %s711
                %s719 = sphi 0, %s750
                %s720 = sphi %s691, %s753
                %s721 = sphi %s702, %s754
              $region59: #{mm_image_encoder_forward.1} parent=55 // loop_header_branch
                %718 = sbr.rel (%p715) target = $region63
              $region60: #{mm_image_encoder_forward.1} parent=55 // loop_body
                %v722 = vld [vmem:[%s720] sm:$0xff]
                %723 = vst [vmem:[%s721] sm:$0xff] %v722
                %v724 = vld [vmem:[%s720 + $0x8] sm:$0xff]
                %725 = vst [vmem:[%s721 + $0x8] sm:$0xff] %v724
                %v726 = vld [vmem:[%s720 + $0x10] sm:$0xff]
                %727 = vst [vmem:[%s721 + $0x10] sm:$0xff] %v726
                %v728 = vld [vmem:[%s720 + $0x18] sm:$0xff]
                %729 = vst [vmem:[%s721 + $0x18] sm:$0xff] %v728
                %v730 = vld [vmem:[%s720 + $0x20] sm:$0xff]
                %731 = vst [vmem:[%s721 + $0x20] sm:$0xff] %v730
                %v732 = vld [vmem:[%s720 + $0x28] sm:$0xff]
                %733 = vst [vmem:[%s721 + $0x28] sm:$0xff] %v732
                %v734 = vld [vmem:[%s720 + $0x30] sm:$0xff]
                %735 = vst [vmem:[%s721 + $0x30] sm:$0xff] %v734
                %v736 = vld [vmem:[%s720 + $0x38] sm:$0xff]
                %737 = vst [vmem:[%s721 + $0x38] sm:$0xff] %v736
                %v738 = vld [vmem:[%s720 + $0x40] sm:$0xff]
                %739 = vst [vmem:[%s721 + $0x40] sm:$0xff] %v738
                %v740 = vld [vmem:[%s720 + $0x48] sm:$0xff]
                %741 = vst [vmem:[%s721 + $0x48] sm:$0xff] %v740
                %v742 = vld [vmem:[%s720 + $0x50] sm:$0xff]
                %743 = vst [vmem:[%s721 + $0x50] sm:$0xff] %v742
                %v744 = vld [vmem:[%s720 + $0x58] sm:$0xff]
                %745 = vst [vmem:[%s721 + $0x58] sm:$0xff] %v744
                %v746 = vld [vmem:[%s720 + $0x60] sm:$0xff]
                %747 = vst [vmem:[%s721 + $0x60] sm:$0xff] %v746
                %s748 = sadd.s32 1, %s719
                %p749 = scmp.ge.s32.totalorder %s748, %s711
                %s750 = scalar_select %p749, 0, %s748
                %s751 = smul.u32 %s750, 104
                %s752 = smul.u32 %s750, 104
                %s753 = scalar_lea.vmem %s691, %s751 [#allocation2]
                %s754 = scalar_lea.vmem %s702, %s752
              $region61: #{mm_image_encoder_forward.1} parent=55 // loop_footer
                %s716 = sadd.s32 %s714, 1
              $region62: #{mm_image_encoder_forward.1} parent=55 // loop_footer_branch
                %713 = sbr.rel target = $region58
              $region63: #{mm_image_encoder_forward.1} parent=55 // loop_exit
                _
              %s755 = sdiv.u32.pop %s698, 13
              %s756 = srem.u32.pop %s698, 13
              %s757 = smul.u32 %s755, 13
              %s758 = smul.u32 8, %s757
              %s759 = scalar_lea.vmem %s691, %s758 [#allocation2]
              %s760 = smul.u32 8, %s757
              %s761 = scalar_lea.vmem %s702, %s760
              // While loop
              $region64: #{mm_image_encoder_forward.1} parent=55 // loop_pre_header
                _
              $region65: #{mm_image_encoder_forward.1} parent=55 // loop_header
                %s763 = sphi 0, %s765
                %p764 = scmp.ge.s32.totalorder %s763, %s756
                %s768 = sphi 0, %s775
                %s769 = sphi %s759, %s778
                %s770 = sphi %s761, %s779
              $region66: #{mm_image_encoder_forward.1} parent=55 // loop_header_branch
                %767 = sbr.rel (%p764) target = $region70
              $region67: #{mm_image_encoder_forward.1} parent=55 // loop_body
                %v771 = vld [vmem:[%s769] sm:$0xff]
                %772 = vst [vmem:[%s770] sm:$0xff] %v771
                %s773 = sadd.s32 1, %s768
                %p774 = scmp.ge.s32.totalorder %s773, %s756
                %s775 = scalar_select %p774, 0, %s773
                %s776 = smul.u32 %s775, 8
                %s777 = smul.u32 %s775, 8
                %s778 = scalar_lea.vmem %s759, %s776 [#allocation2]
                %s779 = scalar_lea.vmem %s761, %s777
              $region68: #{mm_image_encoder_forward.1} parent=55 // loop_footer
                %s765 = sadd.s32 %s763, 1
              $region69: #{mm_image_encoder_forward.1} parent=55 // loop_footer_branch
                %762 = sbr.rel target = $region65
              $region70: #{mm_image_encoder_forward.1} parent=55 // loop_exit
                _
            $region56: #{mm_image_encoder_forward.1} parent=47 // pred_fallthru
              _
          $region48: #{mm_image_encoder_forward.1} parent=43 // pred_fallthru
            _
          %853 = vnop
        $region44: #{mm_image_encoder_forward.1} parent=39 // pred_fallthru
          _
      $region40: #{mm_image_encoder_forward.1} parent=5 // pred_fallthru
        _
      %p854 = scmp.le.s32.totalorder 2, %s11
      // Predicated region
      $region93: #{mm_image_encoder_forward.1} parent=5 // pred_check
        %p855 = pneg %p854
      $region94: #{mm_image_encoder_forward.1} parent=5 // pred_check_branch
        %857 = sbr.rel (%p855) target = $region96
      $region95: #{mm_image_encoder_forward.1} parent=5 // pred_region
        %s858 = ssub.s32 %s11, 2
        // Predicated region
        $region97: #{mm_image_encoder_forward.1} parent=95 // pred_check
          %p859 = pneg %p150
        $region98: #{mm_image_encoder_forward.1} parent=95 // pred_check_branch
          %861 = sbr.rel (%p859) target = $region100
        $region99: #{mm_image_encoder_forward.1} parent=95 // pred_region
          %s862 = sand.u32 %s135, 1
          %s863 = sand.u32 %s135, 1
          %s864 = smul.addr %s863, 104
          %s865 = scalar_lea.vmem [#allocation2], %s864
        $region100: #{mm_image_encoder_forward.1} parent=95 // pred_fallthru
          _
      $region96: #{mm_image_encoder_forward.1} parent=5 // pred_fallthru
        _
    $region6: #{mm_image_encoder_forward.1} parent=1 // loop_footer
      %s15 = sadd.s32 1, %s11
    $region7: #{mm_image_encoder_forward.1} parent=1 // loop_footer_branch
      %10 = sbr.rel target = $region3
    $region8: #{mm_image_encoder_forward.1} parent=1 // loop_exit
      _

</llo_original>
